<compile_context>
chip_gen: v5e
topology: v5e:2x2
jax: 0.10.0
libtpu: 0.0.40
codegen_flags: <defaults>
</compile_context>

<pallas_src>
import jax
import jax.numpy as jnp
from jax.experimental import pallas as pl
from jax.experimental.pallas import tpu as pltpu


def binary_diff_kernel(coeff_ref, x_ref, base_ref, mask_ref, o_ref, acc_ref):
    """Fused: acc += x @ (base + coeff * mask); write out on last K step."""
    k = pl.program_id(2)

    @pl.when(k == 0)
    def _():
        acc_ref[...] = jnp.zeros_like(acc_ref)

    c = coeff_ref[0]  # f32 scalar from SMEM (scalar prefetch)

    # Build the effective weight tile in f32 on the VPU (hides under DMA/MXU),
    # then cast back to the storage/compute dtype for a single MXU matmul.
    w32 = base_ref[...].astype(jnp.float32) + c * mask_ref[...].astype(jnp.float32)
    w = w32.astype(base_ref.dtype)

    acc_ref[...] += jnp.dot(x_ref[...], w, preferred_element_type=jnp.float32)

    @pl.when(k == pl.num_programs(2) - 1)
    def _():
        o_ref[...] = acc_ref[...].astype(o_ref.dtype)


def _pick_tile(dim, preferred, align):
    """Largest tile <= `preferred` that is a multiple of `align` and divides
    `dim` exactly; falls back to the full extent (always a legal block)."""
    if dim <= preferred:
        return dim
    t = (preferred // align) * align
    while t >= align:
        if dim % t == 0:
            return t
        t -= align
    return dim


def binary_diff_forward(x, base_t, mask_t_int8, coeff_f16,
                        *, tm=256, tn=256, tk=256):
    """x: [M, K]; base_t: [K, N] (f32 or bf16); mask_t_int8: [K, N] int8;
    coeff_f16: scalar float16. Returns [M, N] in base_t.dtype."""
    compute_dtype = base_t.dtype          # t = self.base.dtype
    M, K = x.shape
    Kb, N = base_t.shape
    assert K == Kb and mask_t_int8.shape == (K, N)

    x_c = x.astype(compute_dtype)
    # Promote coeff through f32 (avoids f16->bf16 mantissa loss when base is bf16).
    coeff = coeff_f16.astype(jnp.float32).reshape(1)

    tm = _pick_tile(M, tm, 8)             # sublane-aligned (or full extent)
    tn = _pick_tile(N, tn, 128)           # lane-dense output tiles
    tk = _pick_tile(K, tk, 128)           # multiple of 128 also covers int8 (32,128)

    grid = (M // tm, N // tn, K // tk)    # tiles divide exactly by construction

    # VMEM budget at default tiles (double-buffered): x + base + mask + out + acc
    # ~2 MiB f32 / ~1.5 MiB bf16 -- well inside v7x's 64 MiB physical VMEM.
    out = pl.pallas_call(
        binary_diff_kernel,
        out_shape=jax.ShapeDtypeStruct((M, N), compute_dtype),
        grid_spec=pltpu.PrefetchScalarGridSpec(
            num_scalar_prefetch=1,        # coeff -> SMEM scalar
            grid=grid,
            in_specs=[
                pl.BlockSpec((tm, tk), lambda i, j, k, coeff: (i, k)),  # x
                pl.BlockSpec((tk, tn), lambda i, j, k, coeff: (k, j)),  # base_T
                pl.BlockSpec((tk, tn), lambda i, j, k, coeff: (k, j)),  # mask_T (int8)
            ],
            out_specs=pl.BlockSpec((tm, tn), lambda i, j, k, coeff: (i, j)),
            scratch_shapes=[pltpu.VMEM((tm, tn), jnp.float32)],
        ),
        compiler_params=pltpu.CompilerParams(
            dimension_semantics=("parallel", "parallel", "arbitrary"),
            vmem_limit_bytes=48 * 1024 * 1024,
        ),
    )(coeff, x_c, base_t, mask_t_int8)
    return out


if __name__ == "__main__":
    key = jax.random.PRNGKey(0)
    k1, k2, k3 = jax.random.split(key, 3)

    # Small-but-tileable shapes: tokens M = 8, in_features K = 512, out_features N = 256.
    # (K = 512 with TILE_K = 256 exercises the K-reduction accumulator path.)
    M, K, N = 8, 512, 256

    # Deterministic synthetic "base" / "finetune" weights, shape [out, in].
    base_w = jax.random.normal(k1, (N, K), dtype=jnp.float32)
    finetune_w = base_w + 0.05 * jax.random.normal(k2, (N, K), dtype=jnp.float32)

    # __init__ logic (plain JAX glue).
    diff = finetune_w - base_w
    coeff = jnp.mean(jnp.abs(diff.astype(jnp.float32))).astype(jnp.float16)
    mask = jnp.where(diff > 0, 1, 0).astype(jnp.int8)

    base_t = base_w.T            # [K, N] float32 (store as bf16 for bf16 MXU path)
    mask_t = mask.T              # [K, N] int8 -- stays int8 into the kernel

    x = jax.random.normal(k3, (M, K), dtype=jnp.float32)

    y = binary_diff_forward(x, base_t, mask_t, coeff)
    y = jax.block_until_ready(y)

    # Pure-JAX reference (same math as the PyTorch forward: two separate matmuls).
    c32 = coeff.astype(jnp.float32)
    y_ref = x @ base_t + c32 * (x @ mask_t.astype(jnp.float32))
    assert y.shape == (M, N)
    assert jnp.allclose(y, y_ref, atol=1e-2, rtol=1e-2), (
        float(jnp.max(jnp.abs(y - y_ref))))

    print("KERNEL_OK")
</pallas_src>

<mosaic_0001>
module attributes {stable_mosaic.version = 11 : i64} {
  func.func @binary_diff_kernel(%arg0: i32, %arg1: i32, %arg2: i32, %arg3: memref<1xf32, #tpu.memory_space<smem>>, %arg4: memref<8x256xf32, #tpu.memory_space<vmem>>, %arg5: memref<256x256xf32, #tpu.memory_space<vmem>>, %arg6: memref<256x256xi8, #tpu.memory_space<vmem>>, %arg7: memref<8x256xf32, #tpu.memory_space<vmem>>, %arg8: memref<8x256xf32, #tpu.memory_space<vmem>>) attributes {dimension_semantics = [#tpu.dimension_semantics<parallel>, #tpu.dimension_semantics<parallel>, #tpu.dimension_semantics<arbitrary>], iteration_bounds = array<i64: 1, 1, 2>, scalar_prefetch = 1 : i64, scratch_operands = 1 : i64, tpu.core_type = #tpu.core_type<tc>, window_params = [{transform_indices = @transform_0, window_bounds = array<i64: 8, 256>}, {transform_indices = @transform_1, window_bounds = array<i64: 256, 256>}, {transform_indices = @transform_2, window_bounds = array<i64: 256, 256>}, {transform_indices = @transform_3, window_bounds = array<i64: 8, 256>}]} {
    %c0_i32 = arith.constant 0 : i32
    %0 = arith.cmpi eq, %arg2, %c0_i32 : i32
    %1 = arith.extui %0 : i1 to i32
    %c0_i32_0 = arith.constant 0 : i32
    %2 = arith.cmpi ne, %1, %c0_i32_0 : i32
    scf.if %2 {
      %cst_12 = arith.constant 0.000000e+00 : f32
      %18 = vector.broadcast %cst_12 : f32 to vector<8x256xf32>
      %c0_13 = arith.constant 0 : index
      %c0_14 = arith.constant 0 : index
      %19 = vector.load %arg8[%c0_13, %c0_14] : memref<8x256xf32, #tpu.memory_space<vmem>>, vector<8x256xf32>
      tpu.vector_store %arg8[%c0_13, %c0_14], %18 {strides = array<i32>} : memref<8x256xf32, #tpu.memory_space<vmem>>, vector<8x256xf32>,
    } else {
    }
    %c0 = arith.constant 0 : index
    %3 = memref.load %arg3[%c0] : memref<1xf32, #tpu.memory_space<smem>>
    %c0_1 = arith.constant 0 : index
    %c0_2 = arith.constant 0 : index
    %4 = vector.load %arg5[%c0_1, %c0_2] : memref<256x256xf32, #tpu.memory_space<vmem>>, vector<256x256xf32>
    %c0_3 = arith.constant 0 : index
    %c0_4 = arith.constant 0 : index
    %5 = vector.load %arg6[%c0_3, %c0_4] : memref<256x256xi8, #tpu.memory_space<vmem>>, vector<256x256xi8>
    %6 = arith.sitofp %5 : vector<256x256xi8> to vector<256x256xf32>
    %7 = vector.broadcast %3 : f32 to vector<256x256xf32>
    %8 = arith.mulf %7, %6 : vector<256x256xf32>
    %9 = arith.addf %4, %8 : vector<256x256xf32>
    %c0_5 = arith.constant 0 : index
    %c0_6 = arith.constant 0 : index
    %10 = vector.load %arg8[%c0_5, %c0_6] : memref<8x256xf32, #tpu.memory_space<vmem>>, vector<8x256xf32>
    %c0_7 = arith.constant 0 : index
    %c0_8 = arith.constant 0 : index
    %11 = vector.load %arg4[%c0_7, %c0_8] : memref<8x256xf32, #tpu.memory_space<vmem>>, vector<8x256xf32>
    %cst = arith.constant dense<0.000000e+00> : vector<8x256xf32>
    %12 = tpu.matmul %11, %9, %cst {dimension_numbers = #tpu.dot_dimension_numbers<[1], [0], [0], [1], [0, 0, 1, 1], [], []>} : vector<8x256xf32>, vector<256x256xf32>, vector<8x256xf32> -> vector<8x256xf32>
    %13 = arith.addf %10, %12 : vector<8x256xf32>
    %c0_9 = arith.constant 0 : index
    %c0_10 = arith.constant 0 : index
    %14 = vector.load %arg8[%c0_9, %c0_10] : memref<8x256xf32, #tpu.memory_space<vmem>>, vector<8x256xf32>
    tpu.vector_store %arg8[%c0_9, %c0_10], %13 {strides = array<i32>} : memref<8x256xf32, #tpu.memory_space<vmem>>, vector<8x256xf32>,
    %c1_i32 = arith.constant 1 : i32
    %15 = arith.cmpi eq, %arg2, %c1_i32 : i32
    %16 = arith.extui %15 : i1 to i32
    %c0_i32_11 = arith.constant 0 : i32
    %17 = arith.cmpi ne, %16, %c0_i32_11 : i32
    scf.if %17 {
      %c0_12 = arith.constant 0 : index
      %c0_13 = arith.constant 0 : index
      %18 = vector.load %arg8[%c0_12, %c0_13] : memref<8x256xf32, #tpu.memory_space<vmem>>, vector<8x256xf32>
      %c0_14 = arith.constant 0 : index
      %c0_15 = arith.constant 0 : index
      %19 = vector.load %arg7[%c0_14, %c0_15] : memref<8x256xf32, #tpu.memory_space<vmem>>, vector<8x256xf32>
      tpu.vector_store %arg7[%c0_14, %c0_15], %18 {strides = array<i32>} : memref<8x256xf32, #tpu.memory_space<vmem>>, vector<8x256xf32>,
    } else {
    }
    return
  }
  func.func @transform_0(%arg0: i32, %arg1: i32, %arg2: i32, %arg3: memref<1xf32, #tpu.memory_space<smem>>) -> (i32, i32) {
    %c0_i32 = arith.constant 0 : i32
    return %arg0, %arg2 : i32, i32
  }
  func.func @transform_1(%arg0: i32, %arg1: i32, %arg2: i32, %arg3: memref<1xf32, #tpu.memory_space<smem>>) -> (i32, i32) {
    %c0_i32 = arith.constant 0 : i32
    return %arg2, %arg1 : i32, i32
  }
  func.func @transform_2(%arg0: i32, %arg1: i32, %arg2: i32, %arg3: memref<1xf32, #tpu.memory_space<smem>>) -> (i32, i32) {
    %c0_i32 = arith.constant 0 : i32
    return %arg2, %arg1 : i32, i32
  }
  func.func @transform_3(%arg0: i32, %arg1: i32, %arg2: i32, %arg3: memref<1xf32, #tpu.memory_space<smem>>) -> (i32, i32) {
    %c0_i32 = arith.constant 0 : i32
    return %arg0, %arg1 : i32, i32
  }
}

</mosaic_0001>

<llo_original>
// kernel: tpu_custom_call.1
$region0: #{tpu_custom_call.1}
  #allocation0 [shape = 'u32[]', space=smem, size = 0x4, offset = 0x4, fixed_abs, tag = 'smem constant byte address 0x4 - core index']
  #allocation1 [shape = 'u32[72,128]{1,0:T(1,128)}', space=vmem, size = 0x9000, scoped, tag = 'internal scratch']
  #allocation2 [shape = 'f32[8,256]{1,0:T(8,128)}', space=vmem, size = 0x2000, scoped, tag = 'scratch operand']
  #allocation3 [shape = 's32[1]{0}', space=sflag, size = 0x4, scoped, tag = 'scoped memory for tpu_custom_call.1']
  #allocation4 [shape = 'f32[1]{0:T(128)S(6)}', space=smem, size = 0x200, scoped, tag = 'prefetched SMEM operand 0']
  %s0 = inlined_call_operand.<no memory space> [shape: f32[1], index: 0, kind: input, shape index: {}]
  %s1 = inlined_call_operand.hbm [shape: f32[8,512], index: 1, kind: input, shape index: {}]
  %s2 = inlined_call_operand.hbm [shape: f32[512,256], index: 2, kind: input, shape index: {}]
  %s3 = inlined_call_operand.hbm [shape: s8[512,256], index: 3, kind: input, shape index: {}]
  %s4 = inlined_call_operand.hbm [shape: f32[8,256], index: 4, kind: output, shape index: {}]
  %s5 = sld [smem:[#allocation0]]
  $region65: #{tpu_custom_call.1} parent=0
    _
  %s7 = ssub.s32 1, %s5
  %s8 = scalar_select 0, %s7, %s5
  %9 = sst [smem:[#allocation4]] %s0
  $region1: #{tpu_custom_call.1} parent=0
    #allocation5 [shape = 'u8[16384]{0}', space=vmem, size = 0x4000, scoped, tag = 'input window, operand 1']
    #allocation6 [shape = 's32[2]{0}', space=sflag, size = 0x8, scoped, tag = 'scoped memory for tpu_custom_call.1']
    #allocation7 [shape = 's32[2]{0}', space=sflag, size = 0x8, scoped, tag = 'scoped memory for tpu_custom_call.1']
    #allocation8 [shape = 'u8[524288]{0}', space=vmem, size = 0x80000, scoped, tag = 'input window, operand 2']
    #allocation9 [shape = 's32[2]{0}', space=sflag, size = 0x8, scoped, tag = 'scoped memory for tpu_custom_call.1']
    #allocation10 [shape = 'u8[131072]{0}', space=vmem, size = 0x20000, scoped, tag = 'input window, operand 3']
    #allocation11 [shape = 'u8[8192]{0}', space=vmem, size = 0x2000, scoped, tag = 'output window, operand 0, single buffered']
    %10 = vsyncpa [#allocation6], 0
    %s11 = scalar_lea.sflag [#allocation6], 1
    %12 = vsyncpa %s11, 0
    %13 = vsyncpa [#allocation9], 0
    %s14 = scalar_lea.sflag [#allocation9], 1
    %15 = vsyncpa %s14, 0
    %16 = vsyncpa [#allocation7], 0
    loop: start=0, step=1, limit=4
    $region2: #{tpu_custom_call.1} parent=1 // loop_pre_header
      _
    $region3: #{tpu_custom_call.1} parent=1 // loop_header
      %s18 = sphi 0, %s22
      %p19 = scmp.ge.s32.totalorder %s18, 4
      %s25 = sphi 0, %s44
      %s26 = sphi 0, %s40
      %s27 = sphi 0, %s36
      %s28 = sphi 0, %s25
      %s29 = sphi 0, %s26
      %s30 = sphi 0, %s27
      %s31 = sphi 0, %s28
      %s32 = sphi 0, %s29
      %s33 = sphi 0, %s30
      %s49 = sphi 0, %s51
      %s52 = sphi 0, %s49
      %s53 = sphi 0, %s52
      %s69 = sphi 0, %s53
      %s77 = sphi 0, %s79
      %s80 = sphi 0, %s77
      %s81 = sphi 0, %s80
      %s97 = sphi 0, %s81
      %s105 = sphi 0, %s107
      %s108 = sphi 0, %s105
      %s109 = sphi 0, %s108
      %s125 = sphi 0, %s109
      %s133 = sphi 0, %s135
      %s136 = sphi 0, %s133
      %s137 = sphi 0, %s136
      %s153 = sphi 0, %s137
    $region4: #{tpu_custom_call.1} parent=1 // loop_header_branch
      %21 = sbr.rel (%p19) target = $region8
    $region5: #{tpu_custom_call.1} parent=1 // loop_body
      %s23 = ssub.s32 %s18, 1
      %s24 = ssub.s32 %s18, 2
      %s34 = sadd.s32 1, %s27
      %p35 = scmp.ge.s32.totalorder %s34, 2
      %s36 = scalar_select %p35, 0, %s34
      %s37 = sadd.s32 1, %s26
      %s38 = scalar_select %p35, %s37, %s26
      %p39 = scmp.ge.s32.totalorder %s38, 1
      %s40 = scalar_select %p39, 0, %s38
      %s41 = sadd.s32 1, %s25
      %s42 = scalar_select %p39, %s41, %s25
      %p43 = scmp.ge.s32.totalorder %s42, 1
      %s44 = scalar_select %p43, 0, %s42
      %s45 = ssub.s32 %s25, %s44
      %s46 = ssub.s32 %s27, %s36
      %s47 = sor.u32 %s45, %s46
      %p48 = scmp.eq.s32.totalorder %s47, 0
      %s50 = sadd.s32 %s49, 1
      %s51 = scalar_select %p48, %s49, %s50
      %p54 = pneg %p48
      %p55 = scmp.eq.s32.totalorder %s18, 1
      %p56 = por %p54, %p55
      %p57 = scmp.ne.s32.totalorder %s49, %s52
      %p58 = scmp.eq.s32.totalorder %s18, 0
      %p59 = por %p57, %p58
      %p60 = scmp.ne.s32.totalorder %s49, %s52
      %p61 = scmp.eq.s32.totalorder %s23, 1
      %p62 = por %p60, %p61
      %p63 = scmp.ne.s32.totalorder %s52, %s53
      %p64 = scmp.eq.s32.totalorder %s23, 0
      %p65 = por %p63, %p64
      %p66 = scmp.ne.s32.totalorder %s52, %s53
      %p67 = scmp.eq.s32.totalorder %s24, 1
      %p68 = por %p66, %p67
      %p70 = scmp.ne.s32.totalorder %s53, %s69
      %p71 = scmp.eq.s32.totalorder %s24, 0
      %p72 = por %p70, %p71
      %s73 = ssub.s32 %s27, %s36
      %s74 = ssub.s32 %s26, %s40
      %s75 = sor.u32 %s73, %s74
      %p76 = scmp.eq.s32.totalorder %s75, 0
      %s78 = sadd.s32 %s77, 1
      %s79 = scalar_select %p76, %s77, %s78
      %p82 = pneg %p76
      %p83 = scmp.eq.s32.totalorder %s18, 1
      %p84 = por %p82, %p83
      %p85 = scmp.ne.s32.totalorder %s77, %s80
      %p86 = scmp.eq.s32.totalorder %s18, 0
      %p87 = por %p85, %p86
      %p88 = scmp.ne.s32.totalorder %s77, %s80
      %p89 = scmp.eq.s32.totalorder %s23, 1
      %p90 = por %p88, %p89
      %p91 = scmp.ne.s32.totalorder %s80, %s81
      %p92 = scmp.eq.s32.totalorder %s23, 0
      %p93 = por %p91, %p92
      %p94 = scmp.ne.s32.totalorder %s80, %s81
      %p95 = scmp.eq.s32.totalorder %s24, 1
      %p96 = por %p94, %p95
      %p98 = scmp.ne.s32.totalorder %s81, %s97
      %p99 = scmp.eq.s32.totalorder %s24, 0
      %p100 = por %p98, %p99
      %s101 = ssub.s32 %s27, %s36
      %s102 = ssub.s32 %s26, %s40
      %s103 = sor.u32 %s101, %s102
      %p104 = scmp.eq.s32.totalorder %s103, 0
      %s106 = sadd.s32 %s105, 1
      %s107 = scalar_select %p104, %s105, %s106
      %p110 = pneg %p104
      %p111 = scmp.eq.s32.totalorder %s18, 1
      %p112 = por %p110, %p111
      %p113 = scmp.ne.s32.totalorder %s105, %s108
      %p114 = scmp.eq.s32.totalorder %s18, 0
      %p115 = por %p113, %p114
      %p116 = scmp.ne.s32.totalorder %s105, %s108
      %p117 = scmp.eq.s32.totalorder %s23, 1
      %p118 = por %p116, %p117
      %p119 = scmp.ne.s32.totalorder %s108, %s109
      %p120 = scmp.eq.s32.totalorder %s23, 0
      %p121 = por %p119, %p120
      %p122 = scmp.ne.s32.totalorder %s108, %s109
      %p123 = scmp.eq.s32.totalorder %s24, 1
      %p124 = por %p122, %p123
      %p126 = scmp.ne.s32.totalorder %s109, %s125
      %p127 = scmp.eq.s32.totalorder %s24, 0
      %p128 = por %p126, %p127
      %s129 = ssub.s32 %s25, %s44
      %s130 = ssub.s32 %s26, %s40
      %s131 = sor.u32 %s129, %s130
      %p132 = scmp.eq.s32.totalorder %s131, 0
      %s134 = sadd.s32 %s133, 1
      %s135 = scalar_select %p132, %s133, %s134
      %p138 = pneg %p132
      %p139 = scmp.eq.s32.totalorder %s18, 1
      %p140 = por %p138, %p139
      %p141 = scmp.ne.s32.totalorder %s133, %s136
      %p142 = scmp.eq.s32.totalorder %s18, 0
      %p143 = por %p141, %p142
      %p144 = scmp.ne.s32.totalorder %s133, %s136
      %p145 = scmp.eq.s32.totalorder %s23, 1
      %p146 = por %p144, %p145
      %p147 = scmp.ne.s32.totalorder %s136, %s137
      %p148 = scmp.eq.s32.totalorder %s23, 0
      %p149 = por %p147, %p148
      %p150 = scmp.ne.s32.totalorder %s136, %s137
      %p151 = scmp.eq.s32.totalorder %s24, 1
      %p152 = por %p150, %p151
      %p154 = scmp.ne.s32.totalorder %s137, %s153
      %p155 = scmp.eq.s32.totalorder %s24, 0
      %p156 = por %p154, %p155
      %p157 = scmp.le.s32.totalorder 1, %s18
      %p158 = scmp.lt.s32.totalorder %s18, 3
      %p159 = pnand %p157, %p158
      %p160 = pneg %p159
      // Predicated region
      $region9: #{tpu_custom_call.1} parent=5 // pred_check
        _
      $region10: #{tpu_custom_call.1} parent=5 // pred_check_branch
        %162 = sbr.rel (%p159) target = $region12
      $region11: #{tpu_custom_call.1} parent=5 // pred_region
        %s163 = ssub.s32 %s18, 1
      $region12: #{tpu_custom_call.1} parent=5 // pred_fallthru
        _
      %p164 = scmp.lt.s32.totalorder %s18, 2
      // Predicated region
      $region13: #{tpu_custom_call.1} parent=5 // pred_check
        %p165 = pneg %p164
      $region14: #{tpu_custom_call.1} parent=5 // pred_check_branch
        %167 = sbr.rel (%p165) target = $region16
      $region15: #{tpu_custom_call.1} parent=5 // pred_region
        // Predicated region
        $region17: #{tpu_custom_call.1} parent=15 // pred_check
          %p168 = pneg %p59
        $region18: #{tpu_custom_call.1} parent=15 // pred_check_branch
          %170 = sbr.rel (%p168) target = $region20
        $region19: #{tpu_custom_call.1} parent=15 // pred_region
          %s171 = sand.u32 %s49, 1
          %s172 = scalar_lea.sflag [#allocation6], %s171
          %s173 = sand.u32 %s49, 1
          %s174 = smul.addr %s173, 16
          %s175 = scalar_lea.vmem [#allocation5], %s174
          %s176 = smul.u32 2, %s27
          %178 = vsyncadd %s172, 0
          %s179 = smul.addr %s25, 4
          %s180 = sadd.s32 %s176, %s179
          %s181 = smul.addr %s180, 8
          %s182 = scalar_lea.hbm %s1, %s181
          %s184 = sshll.u32 %s182, 4
          %s185 = int_to_ptr.hbm [resolvable:$true] %s184
          %s186 = sshll.u32 %s175, 4
          %s187 = int_to_ptr.vmem [resolvable:$true] %s186
          %189 = dma.hbm_to_vmem [thread:$0]  %s185, 256, %s187, %s172
        $region20: #{tpu_custom_call.1} parent=15 // pred_fallthru
          _
        // Predicated region
        $region21: #{tpu_custom_call.1} parent=15 // pred_check
          %p190 = pneg %p87
        $region22: #{tpu_custom_call.1} parent=15 // pred_check_branch
          %192 = sbr.rel (%p190) target = $region24
        $region23: #{tpu_custom_call.1} parent=15 // pred_region
          %s193 = sand.u32 %s18, 1
          %s194 = scalar_lea.sflag [#allocation9], %s193
          %s195 = sand.u32 %s77, 1
          %s196 = smul.addr %s195, 512
          %s197 = scalar_lea.vmem [#allocation8], %s196
          %s198 = smul.u32 32, %s27
          %s199 = smul.u32 2, %s26
          %201 = vsyncadd %s194, 0
          %s202 = smul.addr %s198, 2
          %s203 = sadd.s32 %s199, %s202
          %s204 = smul.addr %s203, 8
          %s205 = scalar_lea.hbm %s2, %s204
          %s206 = sshll.u32 %s205, 4
          %s207 = int_to_ptr.hbm [resolvable:$true] %s206
          %s208 = sshll.u32 %s197, 4
          %s209 = int_to_ptr.vmem [resolvable:$true] %s208
          %214 = dma.hbm_to_vmem [thread:$0]  %s207, 8192, %s209, %s194, 256, 256, 16
        $region24: #{tpu_custom_call.1} parent=15 // pred_fallthru
          _
        // Predicated region
        $region25: #{tpu_custom_call.1} parent=15 // pred_check
          %p215 = pneg %p115
        $region26: #{tpu_custom_call.1} parent=15 // pred_check_branch
          %217 = sbr.rel (%p215) target = $region28
        $region27: #{tpu_custom_call.1} parent=15 // pred_region
          %s218 = sand.u32 %s18, 1
          %s219 = scalar_lea.sflag [#allocation9], %s218
          %s220 = sand.u32 %s105, 1
          %s221 = smul.addr %s220, 128
          %s222 = scalar_lea.vmem [#allocation10], %s221
          %s223 = smul.u32 8, %s27
          %s224 = smul.u32 2, %s26
          %226 = vsyncadd %s219, 0
          %s227 = smul.addr %s223, 2
          %s228 = sadd.s32 %s224, %s227
          %s229 = smul.addr %s228, 8
          %s230 = scalar_lea.hbm %s3, %s229
          %s231 = sshll.u32 %s230, 4
          %s232 = int_to_ptr.hbm [resolvable:$true] %s231
          %s233 = sshll.u32 %s222, 4
          %s234 = int_to_ptr.vmem [resolvable:$true] %s233
          %239 = dma.hbm_to_vmem [thread:$0]  %s232, 2048, %s234, %s219, 256, 256, 16
        $region28: #{tpu_custom_call.1} parent=15 // pred_fallthru
          _
      $region16: #{tpu_custom_call.1} parent=5 // pred_fallthru
        _
      %p240 = scmp.le.s32.totalorder 1, %s18
      %p241 = scmp.lt.s32.totalorder %s18, 3
      %p242 = pnand %p240, %p241
      %p243 = pneg %p242
      // Predicated region
      $region29: #{tpu_custom_call.1} parent=5 // pred_check
        _
      $region30: #{tpu_custom_call.1} parent=5 // pred_check_branch
        %245 = sbr.rel (%p242) target = $region32
      $region31: #{tpu_custom_call.1} parent=5 // pred_region
        %s246 = ssub.s32 %s18, 1
        %s247 = sand.u32 %s52, 1
        %s248 = scalar_lea.sflag [#allocation6], %s247
        %s249 = sand.u32 %s52, 1
        %s250 = smul.addr %s249, 16
        %s251 = scalar_lea.vmem [#allocation5], %s250
        // Predicated region
        $region33: #{tpu_custom_call.1} parent=31 // pred_check
          %p252 = pneg %p65
        $region34: #{tpu_custom_call.1} parent=31 // pred_check_branch
          %254 = sbr.rel (%p252) target = $region36
        $region35: #{tpu_custom_call.1} parent=31 // pred_region
          %256 = dma.done %s248, 256
        $region36: #{tpu_custom_call.1} parent=31 // pred_fallthru
          _
        %s257 = sand.u32 %s23, 1
        %s258 = scalar_lea.sflag [#allocation9], %s257
        %s259 = sand.u32 %s80, 1
        %s260 = smul.addr %s259, 512
        %s261 = scalar_lea.vmem [#allocation8], %s260
        // Predicated region
        $region37: #{tpu_custom_call.1} parent=31 // pred_check
          %p262 = pneg %p93
        $region38: #{tpu_custom_call.1} parent=31 // pred_check_branch
          %264 = sbr.rel (%p262) target = $region40
        $region39: #{tpu_custom_call.1} parent=31 // pred_region
          %266 = dma.done %s258, 8192
        $region40: #{tpu_custom_call.1} parent=31 // pred_fallthru
          _
        %s267 = sand.u32 %s23, 1
        %s268 = scalar_lea.sflag [#allocation9], %s267
        %s269 = sand.u32 %s108, 1
        %s270 = smul.addr %s269, 128
        %s271 = scalar_lea.vmem [#allocation10], %s270
        // Predicated region
        $region41: #{tpu_custom_call.1} parent=31 // pred_check
          %p272 = pneg %p121
        $region42: #{tpu_custom_call.1} parent=31 // pred_check_branch
          %274 = sbr.rel (%p272) target = $region44
        $region43: #{tpu_custom_call.1} parent=31 // pred_region
          %276 = dma.done %s268, 2048
        $region44: #{tpu_custom_call.1} parent=31 // pred_fallthru
          _
        %s277 = sand.u32 %s52, 1
        %s278 = scalar_lea.sflag [#allocation6], %s277
        %s279 = sand.u32 %s52, 1
        %s280 = smul.addr %s279, 16
        %s281 = scalar_lea.vmem [#allocation5], %s280
        %p282 = pneg %p65
        %p283 = pneg %p62
        %s284 = sand.u32 %s23, 1
        %s285 = scalar_lea.sflag [#allocation9], %s284
        %s286 = sand.u32 %s80, 1
        %s287 = smul.addr %s286, 512
        %s288 = scalar_lea.vmem [#allocation8], %s287
        %p289 = pneg %p93
        %p290 = pneg %p90
        %s291 = sand.u32 %s23, 1
        %s292 = scalar_lea.sflag [#allocation9], %s291
        %s293 = sand.u32 %s108, 1
        %s294 = smul.addr %s293, 128
        %s295 = scalar_lea.vmem [#allocation10], %s294
        %p296 = pneg %p121
        %p297 = pneg %p118
        %p298 = pneg %p149
        %p299 = pneg %p146
        %s300 = smul.u32 2, %s30
        %s301 = smul.u32 32, %s30
        %s302 = smul.u32 2, %s29
        %s303 = smul.u32 8, %s30
        %s304 = smul.u32 2, %s29
        %s305 = smul.u32 2, %s29
        %p306 = scmp.eq.s32.totalorder %s30, 0
        // Predicated region
        $region45: #{tpu_custom_call.1} parent=31 // pred_check
          %p307 = pneg %p306
        $region46: #{tpu_custom_call.1} parent=31 // pred_check_branch
          %309 = sbr.rel (%p307) target = $region48
        $region47: #{tpu_custom_call.1} parent=31 // pred_region
          %310 = vst [vmem:[#allocation2] sm:$0xff] 0.0
          %311 = vst [vmem:[#allocation2 + $0x8] sm:$0xff] 0.0
        $region48: #{tpu_custom_call.1} parent=31 // pred_fallthru
          _
        %s312 = sld [smem:[#allocation4]]
        %v313 = vld [vmem:[%s261] sm:$0xff]
        %v314 = vld [vmem:[%s261 + $0x8] sm:$0xff]
        %v315 = vld [vmem:[%s261 + $0x10] sm:$0xff]
        %v316 = vld [vmem:[%s261 + $0x18] sm:$0xff]
        %v317 = vld [vmem:[%s261 + $0x20] sm:$0xff]
        %v318 = vld [vmem:[%s261 + $0x28] sm:$0xff]
        %v319 = vld [vmem:[%s261 + $0x30] sm:$0xff]
        %v320 = vld [vmem:[%s261 + $0x38] sm:$0xff]
        %v321 = vld [vmem:[%s261 + $0x40] sm:$0xff]
        %v322 = vld [vmem:[%s261 + $0x48] sm:$0xff]
        %v323 = vld [vmem:[%s261 + $0x50] sm:$0xff]
        %v324 = vld [vmem:[%s261 + $0x58] sm:$0xff]
        %v325 = vld [vmem:[%s261 + $0x60] sm:$0xff]
        %v326 = vld [vmem:[%s261 + $0x68] sm:$0xff]
        %v327 = vld [vmem:[%s261 + $0x70] sm:$0xff]
        %v328 = vld [vmem:[%s261 + $0x78] sm:$0xff]
        %v329 = vld [vmem:[%s261 + $0x80] sm:$0xff]
        %v330 = vld [vmem:[%s261 + $0x88] sm:$0xff]
        %v331 = vld [vmem:[%s261 + $0x90] sm:$0xff]
        %v332 = vld [vmem:[%s261 + $0x98] sm:$0xff]
        %v333 = vld [vmem:[%s261 + $0xa0] sm:$0xff]
        %v334 = vld [vmem:[%s261 + $0xa8] sm:$0xff]
        %v335 = vld [vmem:[%s261 + $0xb0] sm:$0xff]
        %v336 = vld [vmem:[%s261 + $0xb8] sm:$0xff]
        %v337 = vld [vmem:[%s261 + $0xc0] sm:$0xff]
        %v338 = vld [vmem:[%s261 + $0xc8] sm:$0xff]
        %v339 = vld [vmem:[%s261 + $0xd0] sm:$0xff]
        %v340 = vld [vmem:[%s261 + $0xd8] sm:$0xff]
        %v341 = vld [vmem:[%s261 + $0xe0] sm:$0xff]
        %v342 = vld [vmem:[%s261 + $0xe8] sm:$0xff]
        %v343 = vld [vmem:[%s261 + $0xf0] sm:$0xff]
        %v344 = vld [vmem:[%s261 + $0xf8] sm:$0xff]
        %v345 = vld [vmem:[%s261 + $0x100] sm:$0xff]
        %v346 = vld [vmem:[%s261 + $0x108] sm:$0xff]
        %v347 = vld [vmem:[%s261 + $0x110] sm:$0xff]
        %v348 = vld [vmem:[%s261 + $0x118] sm:$0xff]
        %v349 = vld [vmem:[%s261 + $0x120] sm:$0xff]
        %v350 = vld [vmem:[%s261 + $0x128] sm:$0xff]
        %v351 = vld [vmem:[%s261 + $0x130] sm:$0xff]
        %v352 = vld [vmem:[%s261 + $0x138] sm:$0xff]
        %v353 = vld [vmem:[%s261 + $0x140] sm:$0xff]
        %v354 = vld [vmem:[%s261 + $0x148] sm:$0xff]
        %v355 = vld [vmem:[%s261 + $0x150] sm:$0xff]
        %v356 = vld [vmem:[%s261 + $0x158] sm:$0xff]
        %v357 = vld [vmem:[%s261 + $0x160] sm:$0xff]
        %v358 = vld [vmem:[%s261 + $0x168] sm:$0xff]
        %v359 = vld [vmem:[%s261 + $0x170] sm:$0xff]
        %v360 = vld [vmem:[%s261 + $0x178] sm:$0xff]
        %v361 = vld [vmem:[%s261 + $0x180] sm:$0xff]
        %v362 = vld [vmem:[%s261 + $0x188] sm:$0xff]
        %v363 = vld [vmem:[%s261 + $0x190] sm:$0xff]
        %v364 = vld [vmem:[%s261 + $0x198] sm:$0xff]
        %v365 = vld [vmem:[%s261 + $0x1a0] sm:$0xff]
        %v366 = vld [vmem:[%s261 + $0x1a8] sm:$0xff]
        %v367 = vld [vmem:[%s261 + $0x1b0] sm:$0xff]
        %v368 = vld [vmem:[%s261 + $0x1b8] sm:$0xff]
        %v369 = vld [vmem:[%s261 + $0x1c0] sm:$0xff]
        %v370 = vld [vmem:[%s261 + $0x1c8] sm:$0xff]
        %v371 = vld [vmem:[%s261 + $0x1d0] sm:$0xff]
        %v372 = vld [vmem:[%s261 + $0x1d8] sm:$0xff]
        %v373 = vld [vmem:[%s261 + $0x1e0] sm:$0xff]
        %v374 = vld [vmem:[%s261 + $0x1e8] sm:$0xff]
        %v375 = vld [vmem:[%s261 + $0x1f0] sm:$0xff]
        %v376 = vld [vmem:[%s261 + $0x1f8] sm:$0xff]
        %v377 = vld [vmem:[%s271] sm:$0xff]
        %v378 = vld [vmem:[%s271 + $0x8] sm:$0xff]
        %v379 = vld [vmem:[%s271 + $0x10] sm:$0xff]
        %v380 = vld [vmem:[%s271 + $0x18] sm:$0xff]
        %v381 = vld [vmem:[%s271 + $0x20] sm:$0xff]
        %v382 = vld [vmem:[%s271 + $0x28] sm:$0xff]
        %v383 = vld [vmem:[%s271 + $0x30] sm:$0xff]
        %v384 = vld [vmem:[%s271 + $0x38] sm:$0xff]
        %v385 = vld [vmem:[%s271 + $0x40] sm:$0xff]
        %v386 = vld [vmem:[%s271 + $0x48] sm:$0xff]
        %v387 = vld [vmem:[%s271 + $0x50] sm:$0xff]
        %v388 = vld [vmem:[%s271 + $0x58] sm:$0xff]
        %v389 = vld [vmem:[%s271 + $0x60] sm:$0xff]
        %v390 = vld [vmem:[%s271 + $0x68] sm:$0xff]
        %v391 = vld [vmem:[%s271 + $0x70] sm:$0xff]
        %v392 = vld [vmem:[%s271 + $0x78] sm:$0xff]
        %v393 = vunpack.c.0.s8 %v377
        %v394 = vunpack.c.0.s8 %v378
        %v395 = vunpack.c.1.s8 %v377
        %v396 = vunpack.c.1.s8 %v378
        %v397 = vunpack.c.2.s8 %v377
        %v398 = vunpack.c.2.s8 %v378
        %v399 = vunpack.c.3.s8 %v377
        %v400 = vunpack.c.3.s8 %v378
        %v401 = vunpack.c.0.s8 %v379
        %v402 = vunpack.c.0.s8 %v380
        %v403 = vunpack.c.1.s8 %v379
        %v404 = vunpack.c.1.s8 %v380
        %v405 = vunpack.c.2.s8 %v379
        %v406 = vunpack.c.2.s8 %v380
        %v407 = vunpack.c.3.s8 %v379
        %v408 = vunpack.c.3.s8 %v380
        %v409 = vunpack.c.0.s8 %v381
        %v410 = vunpack.c.0.s8 %v382
        %v411 = vunpack.c.1.s8 %v381
        %v412 = vunpack.c.1.s8 %v382
        %v413 = vunpack.c.2.s8 %v381
        %v414 = vunpack.c.2.s8 %v382
        %v415 = vunpack.c.3.s8 %v381
        %v416 = vunpack.c.3.s8 %v382
        %v417 = vunpack.c.0.s8 %v383
        %v418 = vunpack.c.0.s8 %v384
        %v419 = vunpack.c.1.s8 %v383
        %v420 = vunpack.c.1.s8 %v384
        %v421 = vunpack.c.2.s8 %v383
        %v422 = vunpack.c.2.s8 %v384
        %v423 = vunpack.c.3.s8 %v383
        %v424 = vunpack.c.3.s8 %v384
        %v425 = vunpack.c.0.s8 %v385
        %v426 = vunpack.c.0.s8 %v386
        %v427 = vunpack.c.1.s8 %v385
        %v428 = vunpack.c.1.s8 %v386
        %v429 = vunpack.c.2.s8 %v385
        %v430 = vunpack.c.2.s8 %v386
        %v431 = vunpack.c.3.s8 %v385
        %v432 = vunpack.c.3.s8 %v386
        %v433 = vunpack.c.0.s8 %v387
        %v434 = vunpack.c.0.s8 %v388
        %v435 = vunpack.c.1.s8 %v387
        %v436 = vunpack.c.1.s8 %v388
        %v437 = vunpack.c.2.s8 %v387
        %v438 = vunpack.c.2.s8 %v388
        %v439 = vunpack.c.3.s8 %v387
        %v440 = vunpack.c.3.s8 %v388
        %v441 = vunpack.c.0.s8 %v389
        %v442 = vunpack.c.0.s8 %v390
        %v443 = vunpack.c.1.s8 %v389
        %v444 = vunpack.c.1.s8 %v390
        %v445 = vunpack.c.2.s8 %v389
        %v446 = vunpack.c.2.s8 %v390
        %v447 = vunpack.c.3.s8 %v389
        %v448 = vunpack.c.3.s8 %v390
        %v449 = vunpack.c.0.s8 %v391
        %v450 = vunpack.c.0.s8 %v392
        %v451 = vunpack.c.1.s8 %v391
        %v452 = vunpack.c.1.s8 %v392
        %v453 = vunpack.c.2.s8 %v391
        %v454 = vunpack.c.2.s8 %v392
        %v455 = vunpack.c.3.s8 %v391
        %v456 = vunpack.c.3.s8 %v392
        %v457 = vcvt.s32.f32 %v393
        %v458 = vcvt.s32.f32 %v394
        %v459 = vcvt.s32.f32 %v395
        %v460 = vcvt.s32.f32 %v396
        %v461 = vcvt.s32.f32 %v397
        %v462 = vcvt.s32.f32 %v398
        %v463 = vcvt.s32.f32 %v399
        %v464 = vcvt.s32.f32 %v400
        %v465 = vcvt.s32.f32 %v401
        %v466 = vcvt.s32.f32 %v402
        %v467 = vcvt.s32.f32 %v403
        %v468 = vcvt.s32.f32 %v404
        %v469 = vcvt.s32.f32 %v405
        %v470 = vcvt.s32.f32 %v406
        %v471 = vcvt.s32.f32 %v407
        %v472 = vcvt.s32.f32 %v408
        %v473 = vcvt.s32.f32 %v409
        %v474 = vcvt.s32.f32 %v410
        %v475 = vcvt.s32.f32 %v411
        %v476 = vcvt.s32.f32 %v412
        %v477 = vcvt.s32.f32 %v413
        %v478 = vcvt.s32.f32 %v414
        %v479 = vcvt.s32.f32 %v415
        %v480 = vcvt.s32.f32 %v416
        %v481 = vcvt.s32.f32 %v417
        %v482 = vcvt.s32.f32 %v418
        %v483 = vcvt.s32.f32 %v419
        %v484 = vcvt.s32.f32 %v420
        %v485 = vcvt.s32.f32 %v421
        %v486 = vcvt.s32.f32 %v422
        %v487 = vcvt.s32.f32 %v423
        %v488 = vcvt.s32.f32 %v424
        %v489 = vcvt.s32.f32 %v425
        %v490 = vcvt.s32.f32 %v426
        %v491 = vcvt.s32.f32 %v427
        %v492 = vcvt.s32.f32 %v428
        %v493 = vcvt.s32.f32 %v429
        %v494 = vcvt.s32.f32 %v430
        %v495 = vcvt.s32.f32 %v431
        %v496 = vcvt.s32.f32 %v432
        %v497 = vcvt.s32.f32 %v433
        %v498 = vcvt.s32.f32 %v434
        %v499 = vcvt.s32.f32 %v435
        %v500 = vcvt.s32.f32 %v436
        %v501 = vcvt.s32.f32 %v437
        %v502 = vcvt.s32.f32 %v438
        %v503 = vcvt.s32.f32 %v439
        %v504 = vcvt.s32.f32 %v440
        %v505 = vcvt.s32.f32 %v441
        %v506 = vcvt.s32.f32 %v442
        %v507 = vcvt.s32.f32 %v443
        %v508 = vcvt.s32.f32 %v444
        %v509 = vcvt.s32.f32 %v445
        %v510 = vcvt.s32.f32 %v446
        %v511 = vcvt.s32.f32 %v447
        %v512 = vcvt.s32.f32 %v448
        %v513 = vcvt.s32.f32 %v449
        %v514 = vcvt.s32.f32 %v450
        %v515 = vcvt.s32.f32 %v451
        %v516 = vcvt.s32.f32 %v452
        %v517 = vcvt.s32.f32 %v453
        %v518 = vcvt.s32.f32 %v454
        %v519 = vcvt.s32.f32 %v455
        %v520 = vcvt.s32.f32 %v456
        %v521 = vstv %s312
        %v522 = vmul.f32 %v521, %v457
        %v523 = vmul.f32 %v521, %v458
        %v524 = vmul.f32 %v521, %v459
        %v525 = vmul.f32 %v521, %v460
        %v526 = vmul.f32 %v521, %v461
        %v527 = vmul.f32 %v521, %v462
        %v528 = vmul.f32 %v521, %v463
        %v529 = vmul.f32 %v521, %v464
        %v530 = vmul.f32 %v521, %v465
        %v531 = vmul.f32 %v521, %v466
        %v532 = vmul.f32 %v521, %v467
        %v533 = vmul.f32 %v521, %v468
        %v534 = vmul.f32 %v521, %v469
        %v535 = vmul.f32 %v521, %v470
        %v536 = vmul.f32 %v521, %v471
        %v537 = vmul.f32 %v521, %v472
        %v538 = vmul.f32 %v521, %v473
        %v539 = vmul.f32 %v521, %v474
        %v540 = vmul.f32 %v521, %v475
        %v541 = vmul.f32 %v521, %v476
        %v542 = vmul.f32 %v521, %v477
        %v543 = vmul.f32 %v521, %v478
        %v544 = vmul.f32 %v521, %v479
        %v545 = vmul.f32 %v521, %v480
        %v546 = vmul.f32 %v521, %v481
        %v547 = vmul.f32 %v521, %v482
        %v548 = vmul.f32 %v521, %v483
        %v549 = vmul.f32 %v521, %v484
        %v550 = vmul.f32 %v521, %v485
        %v551 = vmul.f32 %v521, %v486
        %v552 = vmul.f32 %v521, %v487
        %v553 = vmul.f32 %v521, %v488
        %v554 = vmul.f32 %v521, %v489
        %v555 = vmul.f32 %v521, %v490
        %v556 = vmul.f32 %v521, %v491
        %v557 = vmul.f32 %v521, %v492
        %v558 = vmul.f32 %v521, %v493
        %v559 = vmul.f32 %v521, %v494
        %v560 = vmul.f32 %v521, %v495
        %v561 = vmul.f32 %v521, %v496
        %v562 = vmul.f32 %v521, %v497
        %v563 = vmul.f32 %v521, %v498
        %v564 = vmul.f32 %v521, %v499
        %v565 = vmul.f32 %v521, %v500
        %v566 = vmul.f32 %v521, %v501
        %v567 = vmul.f32 %v521, %v502
        %v568 = vmul.f32 %v521, %v503
        %v569 = vmul.f32 %v521, %v504
        %v570 = vmul.f32 %v521, %v505
        %v571 = vmul.f32 %v521, %v506
        %v572 = vmul.f32 %v521, %v507
        %v573 = vmul.f32 %v521, %v508
        %v574 = vmul.f32 %v521, %v509
        %v575 = vmul.f32 %v521, %v510
        %v576 = vmul.f32 %v521, %v511
        %v577 = vmul.f32 %v521, %v512
        %v578 = vmul.f32 %v521, %v513
        %v579 = vmul.f32 %v521, %v514
        %v580 = vmul.f32 %v521, %v515
        %v581 = vmul.f32 %v521, %v516
        %v582 = vmul.f32 %v521, %v517
        %v583 = vmul.f32 %v521, %v518
        %v584 = vmul.f32 %v521, %v519
        %v585 = vmul.f32 %v521, %v520
        %v586 = vadd.f32 %v313, %v522
        %v587 = vadd.f32 %v314, %v523
        %v588 = vadd.f32 %v315, %v524
        %v589 = vadd.f32 %v316, %v525
        %v590 = vadd.f32 %v317, %v526
        %v591 = vadd.f32 %v318, %v527
        %v592 = vadd.f32 %v319, %v528
        %v593 = vadd.f32 %v320, %v529
        %v594 = vadd.f32 %v321, %v530
        %v595 = vadd.f32 %v322, %v531
        %v596 = vadd.f32 %v323, %v532
        %v597 = vadd.f32 %v324, %v533
        %v598 = vadd.f32 %v325, %v534
        %v599 = vadd.f32 %v326, %v535
        %v600 = vadd.f32 %v327, %v536
        %v601 = vadd.f32 %v328, %v537
        %v602 = vadd.f32 %v329, %v538
        %v603 = vadd.f32 %v330, %v539
        %v604 = vadd.f32 %v331, %v540
        %v605 = vadd.f32 %v332, %v541
        %v606 = vadd.f32 %v333, %v542
        %v607 = vadd.f32 %v334, %v543
        %v608 = vadd.f32 %v335, %v544
        %v609 = vadd.f32 %v336, %v545
        %v610 = vadd.f32 %v337, %v546
        %v611 = vadd.f32 %v338, %v547
        %v612 = vadd.f32 %v339, %v548
        %v613 = vadd.f32 %v340, %v549
        %v614 = vadd.f32 %v341, %v550
        %v615 = vadd.f32 %v342, %v551
        %v616 = vadd.f32 %v343, %v552
        %v617 = vadd.f32 %v344, %v553
        %v618 = vadd.f32 %v345, %v554
        %v619 = vadd.f32 %v346, %v555
        %v620 = vadd.f32 %v347, %v556
        %v621 = vadd.f32 %v348, %v557
        %v622 = vadd.f32 %v349, %v558
        %v623 = vadd.f32 %v350, %v559
        %v624 = vadd.f32 %v351, %v560
        %v625 = vadd.f32 %v352, %v561
        %v626 = vadd.f32 %v353, %v562
        %v627 = vadd.f32 %v354, %v563
        %v628 = vadd.f32 %v355, %v564
        %v629 = vadd.f32 %v356, %v565
        %v630 = vadd.f32 %v357, %v566
        %v631 = vadd.f32 %v358, %v567
        %v632 = vadd.f32 %v359, %v568
        %v633 = vadd.f32 %v360, %v569
        %v634 = vadd.f32 %v361, %v570
        %v635 = vadd.f32 %v362, %v571
        %v636 = vadd.f32 %v363, %v572
        %v637 = vadd.f32 %v364, %v573
        %v638 = vadd.f32 %v365, %v574
        %v639 = vadd.f32 %v366, %v575
        %v640 = vadd.f32 %v367, %v576
        %v641 = vadd.f32 %v368, %v577
        %v642 = vadd.f32 %v369, %v578
        %v643 = vadd.f32 %v370, %v579
        %v644 = vadd.f32 %v371, %v580
        %v645 = vadd.f32 %v372, %v581
        %v646 = vadd.f32 %v373, %v582
        %v647 = vadd.f32 %v374, %v583
        %v648 = vadd.f32 %v375, %v584
        %v649 = vadd.f32 %v376, %v585
        %v650 = vld [vmem:[#allocation2] sm:$0xff]
        %v651 = vld [vmem:[#allocation2 + $0x8] sm:$0xff]
        %v652 = vld [vmem:[%s251] sm:$0xff]
        %v653 = vld [vmem:[%s251 + $0x8] sm:$0xff]
        %654 = vmatpush.msra.mxu0 %v616
        %655 = vmatpush.msra.mxu0 %v614
        %656 = vmatpush.msra.mxu0 %v612
        %657 = vmatpush.msra.mxu0 %v610
        %658 = vmatpush.msra.mxu0 %v608
        %659 = vmatpush.msra.mxu0 %v606
        %660 = vmatpush.msra.mxu0 %v604
        %661 = vmatpush.msra.mxu0 %v602
        %662 = vmatpush.msra.mxu0 %v600
        %663 = vmatpush.msra.mxu0 %v598
        %664 = vmatpush.msra.mxu0 %v596
        %665 = vmatpush.msra.mxu0 %v594
        %666 = vmatpush.msra.mxu0 %v592
        %667 = vmatpush.msra.mxu0 %v590
        %668 = vmatpush.msra.mxu0 %v588
        %669 = vmatpush.msra.mxu0 %v586
        %670 = vmatmul.f32.gmra.mxu0 %v652
        %v671 = vpop.f32.mrf.mxu0
        %v672 = vadd.f32 0.0, %v671
        %673 = vdwg.mxu0
        %674 = vmatpush.msra.mxu0 %v648
        %675 = vmatpush.msra.mxu0 %v646
        %676 = vmatpush.msra.mxu0 %v644
        %677 = vmatpush.msra.mxu0 %v642
        %678 = vmatpush.msra.mxu0 %v640
        %679 = vmatpush.msra.mxu0 %v638
        %680 = vmatpush.msra.mxu0 %v636
        %681 = vmatpush.msra.mxu0 %v634
        %682 = vmatpush.msra.mxu0 %v632
        %683 = vmatpush.msra.mxu0 %v630
        %684 = vmatpush.msra.mxu0 %v628
        %685 = vmatpush.msra.mxu0 %v626
        %686 = vmatpush.msra.mxu0 %v624
        %687 = vmatpush.msra.mxu0 %v622
        %688 = vmatpush.msra.mxu0 %v620
        %689 = vmatpush.msra.mxu0 %v618
        %690 = vmatmul.f32.gmra.mxu0 %v653
        %v691 = vpop.f32.mrf.mxu0
        %v692 = vadd.f32 %v672, %v691
        %693 = vdwg.mxu0
        %694 = vmatpush.msra.mxu0 %v617
        %695 = vmatpush.msra.mxu0 %v615
        %696 = vmatpush.msra.mxu0 %v613
        %697 = vmatpush.msra.mxu0 %v611
        %698 = vmatpush.msra.mxu0 %v609
        %699 = vmatpush.msra.mxu0 %v607
        %700 = vmatpush.msra.mxu0 %v605
        %701 = vmatpush.msra.mxu0 %v603
        %702 = vmatpush.msra.mxu0 %v601
        %703 = vmatpush.msra.mxu0 %v599
        %704 = vmatpush.msra.mxu0 %v597
        %705 = vmatpush.msra.mxu0 %v595
        %706 = vmatpush.msra.mxu0 %v593
        %707 = vmatpush.msra.mxu0 %v591
        %708 = vmatpush.msra.mxu0 %v589
        %709 = vmatpush.msra.mxu0 %v587
        %710 = vmatmul.f32.gmra.mxu0 %v652
        %v711 = vpop.f32.mrf.mxu0
        %v712 = vadd.f32 0.0, %v711
        %713 = vdwg.mxu0
        %714 = vmatpush.msra.mxu0 %v649
        %715 = vmatpush.msra.mxu0 %v647
        %716 = vmatpush.msra.mxu0 %v645
        %717 = vmatpush.msra.mxu0 %v643
        %718 = vmatpush.msra.mxu0 %v641
        %719 = vmatpush.msra.mxu0 %v639
        %720 = vmatpush.msra.mxu0 %v637
        %721 = vmatpush.msra.mxu0 %v635
        %722 = vmatpush.msra.mxu0 %v633
        %723 = vmatpush.msra.mxu0 %v631
        %724 = vmatpush.msra.mxu0 %v629
        %725 = vmatpush.msra.mxu0 %v627
        %726 = vmatpush.msra.mxu0 %v625
        %727 = vmatpush.msra.mxu0 %v623
        %728 = vmatpush.msra.mxu0 %v621
        %729 = vmatpush.msra.mxu0 %v619
        %730 = vmatmul.f32.gmra.mxu0 %v653
        %v731 = vpop.f32.mrf.mxu0
        %v732 = vadd.f32 %v712, %v731
        %733 = vdwg.mxu0
        %v734 = vadd.f32 %v650, %v692
        %v735 = vadd.f32 %v651, %v732
        %736 = vst [vmem:[#allocation2] sm:$0xff] %v734
        %737 = vst [vmem:[#allocation2 + $0x8] sm:$0xff] %v735
        %p738 = scmp.eq.s32.totalorder %s30, 1
        // Predicated region
        $region49: #{tpu_custom_call.1} parent=31 // pred_check
          %p739 = pneg %p738
        $region50: #{tpu_custom_call.1} parent=31 // pred_check_branch
          %741 = sbr.rel (%p739) target = $region52
        $region51: #{tpu_custom_call.1} parent=31 // pred_region
          %v742 = vld [vmem:[#allocation2] sm:$0xff]
          %v743 = vld [vmem:[#allocation2 + $0x8] sm:$0xff]
          %744 = vst [vmem:[#allocation11] sm:$0xff] %v742
          %745 = vst [vmem:[#allocation11 + $0x8] sm:$0xff] %v743
        $region52: #{tpu_custom_call.1} parent=31 // pred_fallthru
          _
        // Predicated region
        $region53: #{tpu_custom_call.1} parent=31 // pred_check
          %p746 = pneg %p146
        $region54: #{tpu_custom_call.1} parent=31 // pred_check_branch
          %748 = sbr.rel (%p746) target = $region56
        $region55: #{tpu_custom_call.1} parent=31 // pred_region
          %s749 = smul.u32 2, %s29
          %751 = vsyncadd [#allocation7], 0
          %s752 = smul.addr %s28, 2
          %s753 = sadd.s32 %s749, %s752
          %s754 = smul.addr %s753, 8
          %s755 = scalar_lea.hbm %s4, %s754
          %s757 = sshll.u32 [#allocation11], 4
          %s758 = int_to_ptr.vmem [resolvable:$true] %s757
          %s759 = sshll.u32 %s755, 4
          %s760 = int_to_ptr.hbm [resolvable:$true] %s759
          %762 = dma.vmem_to_hbm [thread:$0]  %s758, 256, %s760, [#allocation7]
        $region56: #{tpu_custom_call.1} parent=31 // pred_fallthru
          _
        // Predicated region
        $region57: #{tpu_custom_call.1} parent=31 // pred_check
          %p763 = pneg %p146
        $region58: #{tpu_custom_call.1} parent=31 // pred_check_branch
          %765 = sbr.rel (%p763) target = $region60
        $region59: #{tpu_custom_call.1} parent=31 // pred_region
          %767 = dma.done [#allocation7], 256
        $region60: #{tpu_custom_call.1} parent=31 // pred_fallthru
          _
      $region32: #{tpu_custom_call.1} parent=5 // pred_fallthru
        _
      %p768 = scmp.le.s32.totalorder 2, %s18
      // Predicated region
      $region61: #{tpu_custom_call.1} parent=5 // pred_check
        %p769 = pneg %p768
      $region62: #{tpu_custom_call.1} parent=5 // pred_check_branch
        %771 = sbr.rel (%p769) target = $region64
      $region63: #{tpu_custom_call.1} parent=5 // pred_region
        %s772 = ssub.s32 %s18, 2
      $region64: #{tpu_custom_call.1} parent=5 // pred_fallthru
        _
    $region6: #{tpu_custom_call.1} parent=1 // loop_footer
      %s22 = sadd.s32 1, %s18
    $region7: #{tpu_custom_call.1} parent=1 // loop_footer_branch
      %17 = sbr.rel target = $region3
    $region8: #{tpu_custom_call.1} parent=1 // loop_exit
      _
    %773 = vsyncpa [#allocation6], 1
    %s774 = scalar_lea.sflag [#allocation6], 1
    %775 = vsyncpa %s774, 1
    %776 = vsyncpa [#allocation9], 1
    %s777 = scalar_lea.sflag [#allocation9], 1
    %778 = vsyncpa %s777, 1
    %779 = vsyncpa [#allocation7], 1
    %s780 = scalar_lea.sflag [#allocation7], 1
    %781 = vsyncpa %s780, 1

</llo_original>
